<compile_context>
chip_gen: v7x
topology: tpu7x:2x2x1
jax: 0.10.0
libtpu: 0.0.40
codegen_flags: <defaults>
</compile_context>

<pallas_src>
import numpy as np
import jax
import jax.numpy as jnp
from jax.experimental import pallas as pl
from jax.experimental.pallas import tpu as pltpu

HIDDEN = 128         # FullyConnectedForecaster([128, 128], ...)
N_LEAD = 10          # len(forecaster_lead_times); interpolation position in [0, 9]
FEAT_PAD = 32        # T+1 = 17 features, padded to a bf16-sublane-friendly 32 (NOT 128)
TILE_ROWS = 256      # rows (B*num_stores) per grid step
MASTER_HIDDEN = 32   # neurons_per_hidden_layer['master'] = [32, 32] (ELU inner, sigmoid output)


def _elu(x):
    return jnp.where(x > 0, x, jnp.exp(x) - 1.0)


# ---------------------------------------------------------------------------
# Pallas kernel: 2-layer forecaster MLP (bf16 MXU operands, f32 accumulate)
#                + folded lead-time interpolation + allocation clip
# ---------------------------------------------------------------------------
def _forecast_alloc_kernel(x_ref, col_ref, w1_ref, b1_ref, w2_ref, b2_ref,
                           w3v_ref, out_ref):
    x = x_ref[...]                                                      # (TILE_ROWS, FEAT_PAD) bf16
    h = jnp.dot(x, w1_ref[...], preferred_element_type=jnp.float32) + b1_ref[...]
    h = _elu(h)                                                         # f32 on VPU/EUP
    h = jnp.dot(h.astype(jnp.bfloat16), w2_ref[...],
                preferred_element_type=jnp.float32) + b2_ref[...]
    h = _elu(h)
    # folded layer-3 + lead-time interpolation: base = h @ (f_w3 @ wvec) ( + b3_eff folded in col )
    base = jnp.sum(h * w3v_ref[...], axis=-1, keepdims=True)            # (TILE_ROWS, 1) f32
    # col = store_inventories.sum(-1) - b3_eff, so clip(base + b3 - inv, 0) == clip(base - col, 0)
    out_ref[...] = jnp.maximum(base - col_ref[...], 0.0)


# ---------------------------------------------------------------------------
# Parameters (deterministic synthetic init)
# ---------------------------------------------------------------------------
def init_params(key, feat_dim):
    ks = jax.random.split(key, 6)

    def lin(k, fan_in, fan_out):
        w = jax.random.normal(k, (fan_in, fan_out), jnp.float32) / np.sqrt(fan_in)
        b = jax.random.normal(jax.random.fold_in(k, 1), (fan_out,), jnp.float32) * 0.01
        return w, b

    p = {}
    p['f_w1'], p['f_b1'] = lin(ks[0], feat_dim, HIDDEN)
    p['f_w2'], p['f_b2'] = lin(ks[1], HIDDEN, HIDDEN)
    p['f_w3'], p['f_b3'] = lin(ks[2], HIDDEN, N_LEAD)
    p['m_w1'], p['m_b1'] = lin(ks[3], 1, MASTER_HIDDEN)
    p['m_w2'], p['m_b2'] = lin(ks[4], MASTER_HIDDEN, MASTER_HIDDEN)
    p['m_w3'], p['m_b3'] = lin(ks[5], MASTER_HIDDEN, 1)
    return p


def master_zero_to_one(p):
    # self.net['master'](torch.tensor([0.0])) -- single-scalar MLP; glue, not the hot path.
    x = jnp.zeros((1, 1), jnp.float32)
    h = _elu(x @ p['m_w1'] + p['m_b1'])
    h = _elu(h @ p['m_w2'] + p['m_b2'])
    out = jax.nn.sigmoid(h @ p['m_w3'] + p['m_b3'])   # output_layer_activation = 'sigmoid'
    return out[0, 0]


# ---------------------------------------------------------------------------
# Forward wrapper
# ---------------------------------------------------------------------------
def weekly_forecast_nn_forward(params, observation):
    past_demands = observation['past_demands']              # (B, S, T)
    days = observation['days_from_christmas']                # (B, 1)
    store_inventories = observation['store_inventories']     # (B, S, I)
    B, S, T = past_demands.shape
    feat = T + 1
    assert feat <= FEAT_PAD
    rows = B * S
    rows_pad = ((rows + TILE_ROWS - 1) // TILE_ROWS) * TILE_ROWS

    # forecaster input: cat([past_demands, days_from_christmas expanded], dim=2)
    days_exp = jnp.broadcast_to(days[:, None, :], (B, S, 1))
    x = jnp.concatenate([past_demands, days_exp], axis=2).reshape(rows, feat)

    # bf16 MXU operands; features padded only to 32 lanes (no 128-lane HBM inflation).
    x_pad = jnp.zeros((rows_pad, FEAT_PAD), jnp.bfloat16).at[:rows, :feat].set(
        x.astype(jnp.bfloat16))
    w1 = jnp.zeros((FEAT_PAD, HIDDEN), jnp.bfloat16).at[:feat].set(
        params['f_w1'].astype(jnp.bfloat16))
    b1 = params['f_b1'].reshape(1, HIDDEN)
    w2 = params['f_w2'].astype(jnp.bfloat16)
    b2 = params['f_b2'].reshape(1, HIDDEN)

    # master net + interpolation weights (tiny scalar work -> plain JAX glue),
    # then fold the interpolation into layer 3: w3_eff = f_w3 @ wvec, b3_eff = f_b3 @ wvec.
    zero_to_one = master_zero_to_one(params)
    pos = zero_to_one * 9.0
    lower = jnp.floor(pos).astype(jnp.int32)
    upper = jnp.ceil(pos).astype(jnp.int32)
    uw = pos - lower.astype(jnp.float32)
    lw = 1.0 - uw
    wvec10 = jnp.zeros((N_LEAD,), jnp.float32).at[lower].add(lw).at[upper].add(uw)
    w3_eff = (params['f_w3'] @ wvec10).reshape(1, HIDDEN)    # (1, 128) f32
    b3_eff = params['f_b3'] @ wvec10                         # scalar

    # single f32 column carrying (sum of inventories) - b3_eff
    inv_sum = store_inventories.reshape(rows, -1).astype(jnp.float32).sum(axis=-1)
    col = jnp.zeros((rows_pad, 1), jnp.float32).at[:rows, 0].set(inv_sum - b3_eff)

    grid = (rows_pad // TILE_ROWS,)
    full = lambda i: (0, 0)
    row_map = lambda i: (i, 0)

    out = pl.pallas_call(
        _forecast_alloc_kernel,
        out_shape=jax.ShapeDtypeStruct((rows_pad, 1), jnp.float32),
        grid_spec=pltpu.PrefetchScalarGridSpec(
            num_scalar_prefetch=0,
            grid=grid,
            in_specs=[
                pl.BlockSpec((TILE_ROWS, FEAT_PAD), row_map),   # x (bf16)
                pl.BlockSpec((TILE_ROWS, 1), row_map),          # inv_sum - b3_eff (f32)
                pl.BlockSpec((FEAT_PAD, HIDDEN), full),         # w1 (bf16)
                pl.BlockSpec((1, HIDDEN), full),                # b1 (f32)
                pl.BlockSpec((HIDDEN, HIDDEN), full),           # w2 (bf16)
                pl.BlockSpec((1, HIDDEN), full),                # b2 (f32)
                pl.BlockSpec((1, HIDDEN), full),                # folded w3 * interp weights (f32)
            ],
            out_specs=pl.BlockSpec((TILE_ROWS, 1), row_map),
        ),
        compiler_params=pltpu.CompilerParams(
            dimension_semantics=("parallel",)),
    )(x_pad, col, w1, b1, w2, b2, w3_eff)

    store_allocation = out[:rows, 0].reshape(B, S)
    return {'stores': store_allocation}


# ---------------------------------------------------------------------------
# Pure-JAX reference (mirrors the PyTorch forward, all f32)
# ---------------------------------------------------------------------------
def reference_forward(params, observation):
    past_demands = observation['past_demands']
    days = observation['days_from_christmas']
    store_inventories = observation['store_inventories']
    B, S, T = past_demands.shape
    days_exp = jnp.broadcast_to(days[:, None, :], (B, S, 1))
    x = jnp.concatenate([past_demands, days_exp], axis=2)
    h = _elu(x @ params['f_w1'] + params['f_b1'])
    h = _elu(h @ params['f_w2'] + params['f_b2'])
    fc = h @ params['f_w3'] + params['f_b3']                 # (B, S, N_LEAD)
    zero_to_one = master_zero_to_one(params)
    pos = zero_to_one * 9.0
    lower = jnp.floor(pos).astype(jnp.int32)
    upper = jnp.ceil(pos).astype(jnp.int32)
    uw = pos - lower.astype(jnp.float32)
    lw = 1.0 - uw
    base = lw * fc[:, :, lower] + uw * fc[:, :, upper]       # (B, S)
    alloc = jnp.maximum(base - store_inventories.sum(axis=2), 0.0)
    return {'stores': alloc}


if __name__ == "__main__":
    key = jax.random.PRNGKey(0)
    B, S, T, I = 2, 4, 16, 3
    k1, k2, k3, kp = jax.random.split(key, 4)
    observation = {
        'past_demands': jax.random.uniform(k1, (B, S, T), jnp.float32, 0.0, 5.0),
        'days_from_christmas': jax.random.uniform(k2, (B, 1), jnp.float32, 0.0, 1.0),
        'store_inventories': jax.random.uniform(k3, (B, S, I), jnp.float32, 0.0, 2.0),
        # present in the observation dict but unused by this forward:
        'underage_costs': jnp.ones((B, S), jnp.float32),
        'holding_costs': jnp.ones((B, S), jnp.float32),
        'lead_times': jnp.ones((B, S), jnp.int32),
    }
    params = init_params(kp, feat_dim=T + 1)

    out = weekly_forecast_nn_forward(params, observation)
    jax.block_until_ready(out['stores'])

    ref = reference_forward(params, observation)
    # tolerance sized for bf16 MXU operands (f32 accumulation) vs. the f32 reference
    np.testing.assert_allclose(np.asarray(out['stores']), np.asarray(ref['stores']),
                               rtol=2e-2, atol=1e-1)
    print("KERNEL_OK")
</pallas_src>

<mosaic_0001>
module attributes {stable_mosaic.version = 11 : i64} {
  func.func @_forecast_alloc_kernel(%arg0: i32, %arg1: memref<256x32xbf16, #tpu.memory_space<vmem>>, %arg2: memref<256x1xf32, #tpu.memory_space<vmem>>, %arg3: memref<32x128xbf16, #tpu.memory_space<vmem>>, %arg4: memref<1x128xf32, #tpu.memory_space<vmem>>, %arg5: memref<128x128xbf16, #tpu.memory_space<vmem>>, %arg6: memref<1x128xf32, #tpu.memory_space<vmem>>, %arg7: memref<1x128xf32, #tpu.memory_space<vmem>>, %arg8: memref<256x1xf32, #tpu.memory_space<vmem>>) attributes {dimension_semantics = [#tpu.dimension_semantics<parallel>], iteration_bounds = array<i64: 1>, scalar_prefetch = 0 : i64, scratch_operands = 0 : i64, tpu.core_type = #tpu.core_type<tc>, window_params = [{transform_indices = @transform_0, window_bounds = array<i64: 256, 32>}, {transform_indices = @transform_1, window_bounds = array<i64: 256, 1>}, {pipeline_mode = #tpu.pipeline_mode<synchronous>, transform_indices = @transform_2, window_bounds = array<i64: 32, 128>}, {pipeline_mode = #tpu.pipeline_mode<synchronous>, transform_indices = @transform_3, window_bounds = array<i64: 1, 128>}, {pipeline_mode = #tpu.pipeline_mode<synchronous>, transform_indices = @transform_4, window_bounds = array<i64: 128, 128>}, {pipeline_mode = #tpu.pipeline_mode<synchronous>, transform_indices = @transform_5, window_bounds = array<i64: 1, 128>}, {pipeline_mode = #tpu.pipeline_mode<synchronous>, transform_indices = @transform_6, window_bounds = array<i64: 1, 128>}, {transform_indices = @transform_7, window_bounds = array<i64: 256, 1>}]} {
    %c0 = arith.constant 0 : index
    %c0_0 = arith.constant 0 : index
    %0 = vector.load %arg1[%c0, %c0_0] : memref<256x32xbf16, #tpu.memory_space<vmem>>, vector<256x32xbf16>
    %c0_1 = arith.constant 0 : index
    %c0_2 = arith.constant 0 : index
    %1 = vector.load %arg3[%c0_1, %c0_2] : memref<32x128xbf16, #tpu.memory_space<vmem>>, vector<32x128xbf16>
    %cst = arith.constant dense<0.000000e+00> : vector<256x128xf32>
    %2 = tpu.matmul %0, %1, %cst {dimension_numbers = #tpu.dot_dimension_numbers<[1], [0], [0], [1], [0, 0, 1, 1], [], []>} : vector<256x32xbf16>, vector<32x128xbf16>, vector<256x128xf32> -> vector<256x128xf32>
    %c0_3 = arith.constant 0 : index
    %c0_4 = arith.constant 0 : index
    %3 = vector.load %arg4[%c0_3, %c0_4] : memref<1x128xf32, #tpu.memory_space<vmem>>, vector<1x128xf32>
    %4 = vector.broadcast %3 : vector<1x128xf32> to vector<256x128xf32>
    %5 = arith.addf %2, %4 : vector<256x128xf32>
    %cst_5 = arith.constant 0.000000e+00 : f32
    %6 = vector.broadcast %cst_5 : f32 to vector<256x128xf32>
    %7 = arith.cmpf ogt, %5, %6 : vector<256x128xf32>
    %8 = math.exp %5 : vector<256x128xf32>
    %cst_6 = arith.constant 1.000000e+00 : f32
    %9 = vector.broadcast %cst_6 : f32 to vector<256x128xf32>
    %10 = arith.subf %8, %9 : vector<256x128xf32>
    %11 = arith.select %7, %5, %10 : vector<256x128xi1>, vector<256x128xf32>
    %12 = arith.truncf %11 : vector<256x128xf32> to vector<256x128xbf16>
    %c0_7 = arith.constant 0 : index
    %c0_8 = arith.constant 0 : index
    %13 = vector.load %arg5[%c0_7, %c0_8] : memref<128x128xbf16, #tpu.memory_space<vmem>>, vector<128x128xbf16>
    %cst_9 = arith.constant dense<0.000000e+00> : vector<256x128xf32>
    %14 = tpu.matmul %12, %13, %cst_9 {dimension_numbers = #tpu.dot_dimension_numbers<[1], [0], [0], [1], [0, 0, 1, 1], [], []>} : vector<256x128xbf16>, vector<128x128xbf16>, vector<256x128xf32> -> vector<256x128xf32>
    %c0_10 = arith.constant 0 : index
    %c0_11 = arith.constant 0 : index
    %15 = vector.load %arg6[%c0_10, %c0_11] : memref<1x128xf32, #tpu.memory_space<vmem>>, vector<1x128xf32>
    %16 = vector.broadcast %15 : vector<1x128xf32> to vector<256x128xf32>
    %17 = arith.addf %14, %16 : vector<256x128xf32>
    %cst_12 = arith.constant 0.000000e+00 : f32
    %18 = vector.broadcast %cst_12 : f32 to vector<256x128xf32>
    %19 = arith.cmpf ogt, %17, %18 : vector<256x128xf32>
    %20 = math.exp %17 : vector<256x128xf32>
    %cst_13 = arith.constant 1.000000e+00 : f32
    %21 = vector.broadcast %cst_13 : f32 to vector<256x128xf32>
    %22 = arith.subf %20, %21 : vector<256x128xf32>
    %23 = arith.select %19, %17, %22 : vector<256x128xi1>, vector<256x128xf32>
    %c0_14 = arith.constant 0 : index
    %c0_15 = arith.constant 0 : index
    %24 = vector.load %arg7[%c0_14, %c0_15] : memref<1x128xf32, #tpu.memory_space<vmem>>, vector<1x128xf32>
    %25 = vector.broadcast %24 : vector<1x128xf32> to vector<256x128xf32>
    %26 = arith.mulf %23, %25 : vector<256x128xf32>
    %cst_16 = arith.constant dense<0.000000e+00> : vector<256xf32>
    %27 = vector.multi_reduction <add>, %26, %cst_16 [1] : vector<256x128xf32> to vector<256xf32>
    %28 = vector.shape_cast %27 : vector<256xf32> to vector<256x1xf32>
    %c0_17 = arith.constant 0 : index
    %c0_18 = arith.constant 0 : index
    %29 = vector.load %arg2[%c0_17, %c0_18] : memref<256x1xf32, #tpu.memory_space<vmem>>, vector<256x1xf32>
    %30 = arith.subf %28, %29 : vector<256x1xf32>
    %cst_19 = arith.constant 0.000000e+00 : f32
    %31 = vector.broadcast %cst_19 : f32 to vector<256x1xf32>
    %32 = arith.maximumf %30, %31 : vector<256x1xf32>
    %c0_20 = arith.constant 0 : index
    %c0_21 = arith.constant 0 : index
    %33 = vector.load %arg8[%c0_20, %c0_21] : memref<256x1xf32, #tpu.memory_space<vmem>>, vector<256x1xf32>
    tpu.vector_store %arg8[%c0_20, %c0_21], %32 {strides = array<i32>} : memref<256x1xf32, #tpu.memory_space<vmem>>, vector<256x1xf32>,
    return
  }
  func.func @transform_0(%arg0: i32) -> (i32, i32) {
    %c0_i32 = arith.constant 0 : i32
    %c0_i32_0 = arith.constant 0 : i32
    return %arg0, %c0_i32 : i32, i32
  }
  func.func @transform_1(%arg0: i32) -> (i32, i32) {
    %c0_i32 = arith.constant 0 : i32
    %c0_i32_0 = arith.constant 0 : i32
    return %arg0, %c0_i32 : i32, i32
  }
  func.func @transform_2(%arg0: i32) -> (i32, i32) {
    %c0_i32 = arith.constant 0 : i32
    %c0_i32_0 = arith.constant 0 : i32
    %c0_i32_1 = arith.constant 0 : i32
    return %c0_i32, %c0_i32_0 : i32, i32
  }
  func.func @transform_3(%arg0: i32) -> (i32, i32) {
    %c0_i32 = arith.constant 0 : i32
    %c0_i32_0 = arith.constant 0 : i32
    %c0_i32_1 = arith.constant 0 : i32
    return %c0_i32, %c0_i32_0 : i32, i32
  }
  func.func @transform_4(%arg0: i32) -> (i32, i32) {
    %c0_i32 = arith.constant 0 : i32
    %c0_i32_0 = arith.constant 0 : i32
    %c0_i32_1 = arith.constant 0 : i32
    return %c0_i32, %c0_i32_0 : i32, i32
  }
  func.func @transform_5(%arg0: i32) -> (i32, i32) {
    %c0_i32 = arith.constant 0 : i32
    %c0_i32_0 = arith.constant 0 : i32
    %c0_i32_1 = arith.constant 0 : i32
    return %c0_i32, %c0_i32_0 : i32, i32
  }
  func.func @transform_6(%arg0: i32) -> (i32, i32) {
    %c0_i32 = arith.constant 0 : i32
    %c0_i32_0 = arith.constant 0 : i32
    %c0_i32_1 = arith.constant 0 : i32
    return %c0_i32, %c0_i32_0 : i32, i32
  }
  func.func @transform_7(%arg0: i32) -> (i32, i32) {
    %c0_i32 = arith.constant 0 : i32
    %c0_i32_0 = arith.constant 0 : i32
    return %arg0, %c0_i32 : i32, i32
  }
}

</mosaic_0001>

<llo_original>
// kernel: tpu_custom_call.1
$region0: #{tpu_custom_call.1}
  #allocation0 [shape = 'u32[]', space=smem, size = 0x4, offset = 0x4, fixed_abs, tag = 'smem constant byte address 0x4 - core index']
  #allocation1 [shape = 'u32[144,128]{1,0:T(1,128)}', space=vmem, size = 0x12000, scoped, tag = 'internal scratch']
  %s0 = inlined_call_operand.vmem [shape: bf16[256,32], index: 0, kind: input, shape index: {}]
  %s1 = inlined_call_operand.vmem [shape: f32[256,1], index: 1, kind: input, shape index: {}]
  %s2 = inlined_call_operand.vmem [shape: bf16[32,128], index: 2, kind: input, shape index: {}]
  %s3 = inlined_call_operand.vmem [shape: f32[1,128], index: 3, kind: input, shape index: {}]
  %s4 = inlined_call_operand.vmem [shape: bf16[128,128], index: 4, kind: input, shape index: {}]
  %s5 = inlined_call_operand.vmem [shape: f32[1,128], index: 5, kind: input, shape index: {}]
  %s6 = inlined_call_operand.vmem [shape: f32[1,128], index: 6, kind: input, shape index: {}]
  %s7 = inlined_call_operand.vmem [shape: f32[256,1], index: 7, kind: output, shape index: {}]
  %s8 = sld [smem:[#allocation0]]
  $region38: #{tpu_custom_call.1} parent=0
    _
  %s10 = ssub.s32 1, %s8
  %s11 = scalar_select 0, %s10, %s8
  // Predicated region
  $region2: #{tpu_custom_call.1} parent=0 // pred_check
    _
  $region3: #{tpu_custom_call.1} parent=0 // pred_check_branch
    %13 = sbr.rel (0) target = $region5
  $region4: #{tpu_custom_call.1} parent=0 // pred_region
    _
  $region5: #{tpu_custom_call.1} parent=0 // pred_fallthru
    _
  // Predicated region
  $region6: #{tpu_custom_call.1} parent=0 // pred_check
    _
  $region7: #{tpu_custom_call.1} parent=0 // pred_check_branch
    %15 = sbr.rel (0) target = $region9
  $region8: #{tpu_custom_call.1} parent=0 // pred_region
    _
  $region9: #{tpu_custom_call.1} parent=0 // pred_fallthru
    _
  // Predicated region
  $region10: #{tpu_custom_call.1} parent=0 // pred_check
    _
  $region11: #{tpu_custom_call.1} parent=0 // pred_check_branch
    %17 = sbr.rel (0) target = $region13
  $region12: #{tpu_custom_call.1} parent=0 // pred_region
    _
  $region13: #{tpu_custom_call.1} parent=0 // pred_fallthru
    _
  // Predicated region
  $region14: #{tpu_custom_call.1} parent=0 // pred_check
    _
  $region15: #{tpu_custom_call.1} parent=0 // pred_check_branch
    %19 = sbr.rel (0) target = $region17
  $region16: #{tpu_custom_call.1} parent=0 // pred_region
    _
  $region17: #{tpu_custom_call.1} parent=0 // pred_fallthru
    _
  // Predicated region
  $region18: #{tpu_custom_call.1} parent=0 // pred_check
    _
  $region19: #{tpu_custom_call.1} parent=0 // pred_check_branch
    %21 = sbr.rel (0) target = $region21
  $region20: #{tpu_custom_call.1} parent=0 // pred_region
    _
  $region21: #{tpu_custom_call.1} parent=0 // pred_fallthru
    _
  // Predicated region
  $region22: #{tpu_custom_call.1} parent=0 // pred_check
    _
  $region23: #{tpu_custom_call.1} parent=0 // pred_check_branch
    %23 = sbr.rel (0) target = $region25
  $region24: #{tpu_custom_call.1} parent=0 // pred_region
    _
  $region25: #{tpu_custom_call.1} parent=0 // pred_fallthru
    _
  // Predicated region
  $region26: #{tpu_custom_call.1} parent=0 // pred_check
    _
  $region27: #{tpu_custom_call.1} parent=0 // pred_check_branch
    %25 = sbr.rel (0) target = $region29
  $region28: #{tpu_custom_call.1} parent=0 // pred_region
    _
  $region29: #{tpu_custom_call.1} parent=0 // pred_fallthru
    _
  %v27 = vld [vmem:[%s0] sm:$0xf]
  %v28 = vld [vmem:[%s0 + $0x4] sm:$0xf]
  %v29 = vld [vmem:[%s0 + $0x8] sm:$0xf]
  %v30 = vld [vmem:[%s0 + $0xc] sm:$0xf]
  %v31 = vld [vmem:[%s0 + $0x10] sm:$0xf]
  %v32 = vld [vmem:[%s0 + $0x14] sm:$0xf]
  %v33 = vld [vmem:[%s0 + $0x18] sm:$0xf]
  %v34 = vld [vmem:[%s0 + $0x1c] sm:$0xf]
  %v35 = vld [vmem:[%s0 + $0x20] sm:$0xf]
  %v36 = vld [vmem:[%s0 + $0x24] sm:$0xf]
  %v37 = vld [vmem:[%s0 + $0x28] sm:$0xf]
  %v38 = vld [vmem:[%s0 + $0x2c] sm:$0xf]
  %v39 = vld [vmem:[%s0 + $0x30] sm:$0xf]
  %v40 = vld [vmem:[%s0 + $0x34] sm:$0xf]
  %v41 = vld [vmem:[%s0 + $0x38] sm:$0xf]
  %v42 = vld [vmem:[%s0 + $0x3c] sm:$0xf]
  %v43 = vld [vmem:[%s0 + $0x40] sm:$0xf]
  %v44 = vld [vmem:[%s0 + $0x44] sm:$0xf]
  %v45 = vld [vmem:[%s0 + $0x48] sm:$0xf]
  %v46 = vld [vmem:[%s0 + $0x4c] sm:$0xf]
  %v47 = vld [vmem:[%s0 + $0x50] sm:$0xf]
  %v48 = vld [vmem:[%s0 + $0x54] sm:$0xf]
  %v49 = vld [vmem:[%s0 + $0x58] sm:$0xf]
  %v50 = vld [vmem:[%s0 + $0x5c] sm:$0xf]
  %v51 = vld [vmem:[%s0 + $0x60] sm:$0xf]
  %v52 = vld [vmem:[%s0 + $0x64] sm:$0xf]
  %v53 = vld [vmem:[%s0 + $0x68] sm:$0xf]
  %v54 = vld [vmem:[%s0 + $0x6c] sm:$0xf]
  %v55 = vld [vmem:[%s0 + $0x70] sm:$0xf]
  %v56 = vld [vmem:[%s0 + $0x74] sm:$0xf]
  %v57 = vld [vmem:[%s0 + $0x78] sm:$0xf]
  %v58 = vld [vmem:[%s0 + $0x7c] sm:$0xf]
  %v59 = vld [vmem:[%s2] sm:$0xf]
  %v60 = vld [vmem:[%s2 + $0x4] sm:$0xf]
  %v61 = vld [vmem:[%s2 + $0x8] sm:$0xf]
  %v62 = vld [vmem:[%s2 + $0xc] sm:$0xf]
  %v63 = vld [vmem:[%s3] sm:$0x1]
  %v65 = vlaneseq
  %v66 = vshrl.u32 %v65, 7
  %v67 = vsub.s32 0, %v66
  %v68 = vrot.slane %v63, %v67
  %v102 = vunpack.c.l.b16 %v27
  %v103 = vunpack.c.l.b16 %v28
  %v104 = vunpack.c.l.b16 %v29
  %v105 = vunpack.c.l.b16 %v30
  %v106 = vunpack.c.l.b16 %v31
  %v107 = vunpack.c.l.b16 %v32
  %v108 = vunpack.c.l.b16 %v33
  %v109 = vunpack.c.l.b16 %v34
  %v110 = vunpack.c.l.b16 %v35
  %v111 = vunpack.c.l.b16 %v36
  %v112 = vunpack.c.l.b16 %v37
  %v113 = vunpack.c.l.b16 %v38
  %v114 = vunpack.c.l.b16 %v39
  %v115 = vunpack.c.l.b16 %v40
  %v116 = vunpack.c.l.b16 %v41
  %v117 = vunpack.c.l.b16 %v42
  %v118 = vunpack.c.l.b16 %v43
  %v119 = vunpack.c.l.b16 %v44
  %v120 = vunpack.c.l.b16 %v45
  %v121 = vunpack.c.l.b16 %v46
  %v122 = vunpack.c.l.b16 %v47
  %v123 = vunpack.c.l.b16 %v48
  %v124 = vunpack.c.l.b16 %v49
  %v125 = vunpack.c.l.b16 %v50
  %v126 = vunpack.c.l.b16 %v51
  %v127 = vunpack.c.l.b16 %v52
  %v128 = vunpack.c.l.b16 %v53
  %v129 = vunpack.c.l.b16 %v54
  %v130 = vunpack.c.l.b16 %v55
  %v131 = vunpack.c.l.b16 %v56
  %v132 = vunpack.c.l.b16 %v57
  %v133 = vunpack.c.l.b16 %v58
  %v134 = vpack.c.b16 %v103, %v102
  %v135 = vpack.c.b16 %v105, %v104
  %v136 = vpack.c.b16 %v107, %v106
  %v137 = vpack.c.b16 %v109, %v108
  %v138 = vpack.c.b16 %v111, %v110
  %v139 = vpack.c.b16 %v113, %v112
  %v140 = vpack.c.b16 %v115, %v114
  %v141 = vpack.c.b16 %v117, %v116
  %v142 = vpack.c.b16 %v119, %v118
  %v143 = vpack.c.b16 %v121, %v120
  %v144 = vpack.c.b16 %v123, %v122
  %v145 = vpack.c.b16 %v125, %v124
  %v146 = vpack.c.b16 %v127, %v126
  %v147 = vpack.c.b16 %v129, %v128
  %v148 = vpack.c.b16 %v131, %v130
  %v149 = vpack.c.b16 %v133, %v132
  %v154 = vunpack.c.l.b16 %v59
  %v155 = vunpack.c.l.b16 %v60
  %v156 = vunpack.c.l.b16 %v61
  %v157 = vunpack.c.l.b16 %v62
  %v158 = vpack.c.b16 %v155, %v154
  %v159 = vpack.c.b16 %v157, %v156
  %vm162 = vcmask 261120
  %v164 = vsel %vm162, %v134, 0
  %v167 = vsel %vm162, %v135, 0
  %v170 = vsel %vm162, %v136, 0
  %v173 = vsel %vm162, %v137, 0
  %v176 = vsel %vm162, %v138, 0
  %v179 = vsel %vm162, %v139, 0
  %v182 = vsel %vm162, %v140, 0
  %v185 = vsel %vm162, %v141, 0
  %v188 = vsel %vm162, %v142, 0
  %v191 = vsel %vm162, %v143, 0
  %v194 = vsel %vm162, %v144, 0
  %v197 = vsel %vm162, %v145, 0
  %v200 = vsel %vm162, %v146, 0
  %v203 = vsel %vm162, %v147, 0
  %v206 = vsel %vm162, %v148, 0
  %v209 = vsel %vm162, %v149, 0
  %211 = vmatprep.subr.bf16.mxu0 0
  %212 = vmatpush1.bf16.msra.mxu0 %v158
  %213 = vmatprep.subr.bf16.mxu0 0
  %214 = vmatpush1.bf16.msra.mxu0 %v159
  %215 = vmatprep.subr.bf16.mxu0 0
  %216 = vmatpush1.bf16.msra.mxu0 0
  %217 = vmatprep.subr.bf16.mxu0 0
  %218 = vmatpush1.bf16.msra.mxu0 0
  %219 = vmatprep.subr.bf16.mxu0 0
  %220 = vmatpush1.bf16.msra.mxu0 0
  %221 = vmatprep.subr.bf16.mxu0 0
  %222 = vmatpush1.bf16.msra.mxu0 0
  %223 = vmatprep.subr.bf16.mxu0 0
  %224 = vmatpush1.bf16.msra.mxu0 0
  %225 = vmatprep.subr.bf16.mxu0 0
  %226 = vmatpush1.bf16.msra.mxu0 0
  %227 = vmatprep.subr.bf16.mxu0 0
  %228 = vmatpush1.bf16.msra.mxu0 0
  %229 = vmatprep.subr.bf16.mxu0 0
  %230 = vmatpush1.bf16.msra.mxu0 0
  %231 = vmatprep.subr.bf16.mxu0 0
  %232 = vmatpush1.bf16.msra.mxu0 0
  %233 = vmatprep.subr.bf16.mxu0 0
  %234 = vmatpush1.bf16.msra.mxu0 0
  %235 = vmatprep.subr.bf16.mxu0 0
  %236 = vmatpush1.bf16.msra.mxu0 0
  %237 = vmatprep.subr.bf16.mxu0 0
  %238 = vmatpush1.bf16.msra.mxu0 0
  %239 = vmatprep.subr.bf16.mxu0 0
  %240 = vmatpush1.bf16.msra.mxu0 0
  %241 = vmatprep.subr.bf16.mxu0 0
  %242 = vmatpush1.bf16.msra.mxu0 0
  %243 = vmatprep.mubr.bf16.mxu0 0
  %244 = vmatmul.mubr.bf16.gmra.mrb[0].mxu0 %v164
  %v245 = vpop.f32.mrb[0].mxu0
  %v246 = vadd.f32 %v68, %v245
  %v247 = vpop.f32.mrb[0].mxu0
  %v248 = vpop.f32.mrb[0].mxu0
  %v249 = vadd.f32 %v68, %v248
  %v250 = vpop.f32.mrb[0].mxu0
  %251 = vmatprep.mubr.bf16.mxu0 0
  %252 = vmatmul.mubr.bf16.gmra.mrb[0].mxu0 %v167
  %v253 = vpop.f32.mrb[0].mxu0
  %v254 = vadd.f32 %v68, %v253
  %v255 = vpop.f32.mrb[0].mxu0
  %v256 = vpop.f32.mrb[0].mxu0
  %v257 = vadd.f32 %v68, %v256
  %v258 = vpop.f32.mrb[0].mxu0
  %259 = vmatprep.mubr.bf16.mxu0 0
  %260 = vmatmul.mubr.bf16.gmra.mrb[0].mxu0 %v170
  %v261 = vpop.f32.mrb[0].mxu0
  %v262 = vadd.f32 %v68, %v261
  %v263 = vpop.f32.mrb[0].mxu0
  %v264 = vpop.f32.mrb[0].mxu0
  %v265 = vadd.f32 %v68, %v264
  %v266 = vpop.f32.mrb[0].mxu0
  %267 = vmatprep.mubr.bf16.mxu0 0
  %268 = vmatmul.mubr.bf16.gmra.mrb[0].mxu0 %v173
  %v269 = vpop.f32.mrb[0].mxu0
  %v270 = vadd.f32 %v68, %v269
  %v271 = vpop.f32.mrb[0].mxu0
  %v272 = vpop.f32.mrb[0].mxu0
  %v273 = vadd.f32 %v68, %v272
  %v274 = vpop.f32.mrb[0].mxu0
  %275 = vmatprep.mubr.bf16.mxu0 0
  %276 = vmatmul.mubr.bf16.gmra.mrb[0].mxu0 %v176
  %v277 = vpop.f32.mrb[0].mxu0
  %v278 = vadd.f32 %v68, %v277
  %v279 = vpop.f32.mrb[0].mxu0
  %v280 = vpop.f32.mrb[0].mxu0
  %v281 = vadd.f32 %v68, %v280
  %v282 = vpop.f32.mrb[0].mxu0
  %283 = vmatprep.mubr.bf16.mxu0 0
  %284 = vmatmul.mubr.bf16.gmra.mrb[0].mxu0 %v179
  %v285 = vpop.f32.mrb[0].mxu0
  %v286 = vadd.f32 %v68, %v285
  %v287 = vpop.f32.mrb[0].mxu0
  %v288 = vpop.f32.mrb[0].mxu0
  %v289 = vadd.f32 %v68, %v288
  %v290 = vpop.f32.mrb[0].mxu0
  %291 = vmatprep.mubr.bf16.mxu0 0
  %292 = vmatmul.mubr.bf16.gmra.mrb[0].mxu0 %v182
  %v293 = vpop.f32.mrb[0].mxu0
  %v294 = vadd.f32 %v68, %v293
  %v295 = vpop.f32.mrb[0].mxu0
  %v296 = vpop.f32.mrb[0].mxu0
  %v297 = vadd.f32 %v68, %v296
  %v298 = vpop.f32.mrb[0].mxu0
  %299 = vmatprep.mubr.bf16.mxu0 0
  %300 = vmatmul.mubr.bf16.gmra.mrb[0].mxu0 %v185
  %v301 = vpop.f32.mrb[0].mxu0
  %v302 = vadd.f32 %v68, %v301
  %v303 = vpop.f32.mrb[0].mxu0
  %v304 = vpop.f32.mrb[0].mxu0
  %v305 = vadd.f32 %v68, %v304
  %v306 = vpop.f32.mrb[0].mxu0
  %307 = vmatprep.mubr.bf16.mxu0 0
  %308 = vmatmul.mubr.bf16.gmra.mrb[0].mxu0 %v188
  %v309 = vpop.f32.mrb[0].mxu0
  %v310 = vadd.f32 %v68, %v309
  %v311 = vpop.f32.mrb[0].mxu0
  %v312 = vpop.f32.mrb[0].mxu0
  %v313 = vadd.f32 %v68, %v312
  %v314 = vpop.f32.mrb[0].mxu0
  %315 = vmatprep.mubr.bf16.mxu0 0
  %316 = vmatmul.mubr.bf16.gmra.mrb[0].mxu0 %v191
  %v317 = vpop.f32.mrb[0].mxu0
  %v318 = vadd.f32 %v68, %v317
  %v319 = vpop.f32.mrb[0].mxu0
  %v320 = vpop.f32.mrb[0].mxu0
  %v321 = vadd.f32 %v68, %v320
  %v322 = vpop.f32.mrb[0].mxu0
  %323 = vmatprep.mubr.bf16.mxu0 0
  %324 = vmatmul.mubr.bf16.gmra.mrb[0].mxu0 %v194
  %v325 = vpop.f32.mrb[0].mxu0
  %v326 = vadd.f32 %v68, %v325
  %v327 = vpop.f32.mrb[0].mxu0
  %v328 = vpop.f32.mrb[0].mxu0
  %v329 = vadd.f32 %v68, %v328
  %v330 = vpop.f32.mrb[0].mxu0
  %331 = vmatprep.mubr.bf16.mxu0 0
  %332 = vmatmul.mubr.bf16.gmra.mrb[0].mxu0 %v197
  %v333 = vpop.f32.mrb[0].mxu0
  %v334 = vadd.f32 %v68, %v333
  %v335 = vpop.f32.mrb[0].mxu0
  %v336 = vpop.f32.mrb[0].mxu0
  %v337 = vadd.f32 %v68, %v336
  %v338 = vpop.f32.mrb[0].mxu0
  %339 = vmatprep.mubr.bf16.mxu0 0
  %340 = vmatmul.mubr.bf16.gmra.mrb[0].mxu0 %v200
  %v341 = vpop.f32.mrb[0].mxu0
  %v342 = vadd.f32 %v68, %v341
  %v343 = vpop.f32.mrb[0].mxu0
  %v344 = vpop.f32.mrb[0].mxu0
  %v345 = vadd.f32 %v68, %v344
  %v346 = vpop.f32.mrb[0].mxu0
  %347 = vmatprep.mubr.bf16.mxu0 0
  %348 = vmatmul.mubr.bf16.gmra.mrb[0].mxu0 %v203
  %v349 = vpop.f32.mrb[0].mxu0
  %v350 = vadd.f32 %v68, %v349
  %v351 = vpop.f32.mrb[0].mxu0
  %v352 = vpop.f32.mrb[0].mxu0
  %v353 = vadd.f32 %v68, %v352
  %v354 = vpop.f32.mrb[0].mxu0
  %355 = vmatprep.mubr.bf16.mxu0 0
  %356 = vmatmul.mubr.bf16.gmra.mrb[0].mxu0 %v206
  %v357 = vpop.f32.mrb[0].mxu0
  %v358 = vadd.f32 %v68, %v357
  %v359 = vpop.f32.mrb[0].mxu0
  %v360 = vpop.f32.mrb[0].mxu0
  %v361 = vadd.f32 %v68, %v360
  %v362 = vpop.f32.mrb[0].mxu0
  %363 = vmatprep.mubr.bf16.mxu0 0
  %364 = vmatmul.mubr.bf16.gmra.mrb[0].mxu0 %v209
  %v365 = vpop.f32.mrb[0].mxu0
  %v366 = vadd.f32 %v68, %v365
  %v367 = vpop.f32.mrb[0].mxu0
  %v368 = vpop.f32.mrb[0].mxu0
  %v369 = vadd.f32 %v68, %v368
  %v370 = vpop.f32.mrb[0].mxu0
  %371 = vdwg.mxu0
  %vm372 = vcmp.gt.f32.partialorder %v246, 0.0
  %vm373 = vcmp.gt.f32.partialorder %v249, 0.0
  %vm374 = vcmp.gt.f32.partialorder %v254, 0.0
  %vm375 = vcmp.gt.f32.partialorder %v257, 0.0
  %vm376 = vcmp.gt.f32.partialorder %v262, 0.0
  %vm377 = vcmp.gt.f32.partialorder %v265, 0.0
  %vm378 = vcmp.gt.f32.partialorder %v270, 0.0
  %vm379 = vcmp.gt.f32.partialorder %v273, 0.0
  %vm380 = vcmp.gt.f32.partialorder %v278, 0.0
  %vm381 = vcmp.gt.f32.partialorder %v281, 0.0
  %vm382 = vcmp.gt.f32.partialorder %v286, 0.0
  %vm383 = vcmp.gt.f32.partialorder %v289, 0.0
  %vm384 = vcmp.gt.f32.partialorder %v294, 0.0
  %vm385 = vcmp.gt.f32.partialorder %v297, 0.0
  %vm386 = vcmp.gt.f32.partialorder %v302, 0.0
  %vm387 = vcmp.gt.f32.partialorder %v305, 0.0
  %vm388 = vcmp.gt.f32.partialorder %v310, 0.0
  %vm389 = vcmp.gt.f32.partialorder %v313, 0.0
  %vm390 = vcmp.gt.f32.partialorder %v318, 0.0
  %vm391 = vcmp.gt.f32.partialorder %v321, 0.0
  %vm392 = vcmp.gt.f32.partialorder %v326, 0.0
  %vm393 = vcmp.gt.f32.partialorder %v329, 0.0
  %vm394 = vcmp.gt.f32.partialorder %v334, 0.0
  %vm395 = vcmp.gt.f32.partialorder %v337, 0.0
  %vm396 = vcmp.gt.f32.partialorder %v342, 0.0
  %vm397 = vcmp.gt.f32.partialorder %v345, 0.0
  %vm398 = vcmp.gt.f32.partialorder %v350, 0.0
  %vm399 = vcmp.gt.f32.partialorder %v353, 0.0
  %vm400 = vcmp.gt.f32.partialorder %v358, 0.0
  %vm401 = vcmp.gt.f32.partialorder %v361, 0.0
  %vm402 = vcmp.gt.f32.partialorder %v366, 0.0
  %vm403 = vcmp.gt.f32.partialorder %v369, 0.0
  %v404 = vmul.f32 %v246, 1.442695
  %v405 = vpow.pop %v404
  %v406 = vmul.f32 %v249, 1.442695
  %v407 = vpow.pop %v406
  %v408 = vmul.f32 %v254, 1.442695
  %v409 = vpow.pop %v408
  %v410 = vmul.f32 %v257, 1.442695
  %v411 = vpow.pop %v410
  %v412 = vmul.f32 %v262, 1.442695
  %v413 = vpow.pop %v412
  %v414 = vmul.f32 %v265, 1.442695
  %v415 = vpow.pop %v414
  %v416 = vmul.f32 %v270, 1.442695
  %v417 = vpow.pop %v416
  %v418 = vmul.f32 %v273, 1.442695
  %v419 = vpow.pop %v418
  %v420 = vmul.f32 %v278, 1.442695
  %v421 = vpow.pop %v420
  %v422 = vmul.f32 %v281, 1.442695
  %v423 = vpow.pop %v422
  %v424 = vmul.f32 %v286, 1.442695
  %v425 = vpow.pop %v424
  %v426 = vmul.f32 %v289, 1.442695
  %v427 = vpow.pop %v426
  %v428 = vmul.f32 %v294, 1.442695
  %v429 = vpow.pop %v428
  %v430 = vmul.f32 %v297, 1.442695
  %v431 = vpow.pop %v430
  %v432 = vmul.f32 %v302, 1.442695
  %v433 = vpow.pop %v432
  %v434 = vmul.f32 %v305, 1.442695
  %v435 = vpow.pop %v434
  %v436 = vmul.f32 %v310, 1.442695
  %v437 = vpow.pop %v436
  %v438 = vmul.f32 %v313, 1.442695
  %v439 = vpow.pop %v438
  %v440 = vmul.f32 %v318, 1.442695
  %v441 = vpow.pop %v440
  %v442 = vmul.f32 %v321, 1.442695
  %v443 = vpow.pop %v442
  %v444 = vmul.f32 %v326, 1.442695
  %v445 = vpow.pop %v444
  %v446 = vmul.f32 %v329, 1.442695
  %v447 = vpow.pop %v446
  %v448 = vmul.f32 %v334, 1.442695
  %v449 = vpow.pop %v448
  %v450 = vmul.f32 %v337, 1.442695
  %v451 = vpow.pop %v450
  %v452 = vmul.f32 %v342, 1.442695
  %v453 = vpow.pop %v452
  %v454 = vmul.f32 %v345, 1.442695
  %v455 = vpow.pop %v454
  %v456 = vmul.f32 %v350, 1.442695
  %v457 = vpow.pop %v456
  %v458 = vmul.f32 %v353, 1.442695
  %v459 = vpow.pop %v458
  %v460 = vmul.f32 %v358, 1.442695
  %v461 = vpow.pop %v460
  %v462 = vmul.f32 %v361, 1.442695
  %v463 = vpow.pop %v462
  %v464 = vmul.f32 %v366, 1.442695
  %v465 = vpow.pop %v464
  %v466 = vmul.f32 %v369, 1.442695
  %v467 = vpow.pop %v466
  %v468 = vsub.f32 %v405, 1.0
  %v469 = vsub.f32 %v407, 1.0
  %v470 = vsub.f32 %v409, 1.0
  %v471 = vsub.f32 %v411, 1.0
  %v472 = vsub.f32 %v413, 1.0
  %v473 = vsub.f32 %v415, 1.0
  %v474 = vsub.f32 %v417, 1.0
  %v475 = vsub.f32 %v419, 1.0
  %v476 = vsub.f32 %v421, 1.0
  %v477 = vsub.f32 %v423, 1.0
  %v478 = vsub.f32 %v425, 1.0
  %v479 = vsub.f32 %v427, 1.0
  %v480 = vsub.f32 %v429, 1.0
  %v481 = vsub.f32 %v431, 1.0
  %v482 = vsub.f32 %v433, 1.0
  %v483 = vsub.f32 %v435, 1.0
  %v484 = vsub.f32 %v437, 1.0
  %v485 = vsub.f32 %v439, 1.0
  %v486 = vsub.f32 %v441, 1.0
  %v487 = vsub.f32 %v443, 1.0
  %v488 = vsub.f32 %v445, 1.0
  %v489 = vsub.f32 %v447, 1.0
  %v490 = vsub.f32 %v449, 1.0
  %v491 = vsub.f32 %v451, 1.0
  %v492 = vsub.f32 %v453, 1.0
  %v493 = vsub.f32 %v455, 1.0
  %v494 = vsub.f32 %v457, 1.0
  %v495 = vsub.f32 %v459, 1.0
  %v496 = vsub.f32 %v461, 1.0
  %v497 = vsub.f32 %v463, 1.0
  %v498 = vsub.f32 %v465, 1.0
  %v499 = vsub.f32 %v467, 1.0
  %v500 = vsel %vm372, %v246, %v468
  %v501 = vsel %vm373, %v249, %v469
  %v502 = vsel %vm374, %v254, %v470
  %v503 = vsel %vm375, %v257, %v471
  %v504 = vsel %vm376, %v262, %v472
  %v505 = vsel %vm377, %v265, %v473
  %v506 = vsel %vm378, %v270, %v474
  %v507 = vsel %vm379, %v273, %v475
  %v508 = vsel %vm380, %v278, %v476
  %v509 = vsel %vm381, %v281, %v477
  %v510 = vsel %vm382, %v286, %v478
  %v511 = vsel %vm383, %v289, %v479
  %v512 = vsel %vm384, %v294, %v480
  %v513 = vsel %vm385, %v297, %v481
  %v514 = vsel %vm386, %v302, %v482
  %v515 = vsel %vm387, %v305, %v483
  %v516 = vsel %vm388, %v310, %v484
  %v517 = vsel %vm389, %v313, %v485
  %v518 = vsel %vm390, %v318, %v486
  %v519 = vsel %vm391, %v321, %v487
  %v520 = vsel %vm392, %v326, %v488
  %v521 = vsel %vm393, %v329, %v489
  %v522 = vsel %vm394, %v334, %v490
  %v523 = vsel %vm395, %v337, %v491
  %v524 = vsel %vm396, %v342, %v492
  %v525 = vsel %vm397, %v345, %v493
  %v526 = vsel %vm398, %v350, %v494
  %v527 = vsel %vm399, %v353, %v495
  %v528 = vsel %vm400, %v358, %v496
  %v529 = vsel %vm401, %v361, %v497
  %v530 = vsel %vm402, %v366, %v498
  %v531 = vsel %vm403, %v369, %v499
  %v532 = vpack.c.bf16 %v501, %v500
  %v533 = vpack.c.bf16 %v503, %v502
  %v534 = vpack.c.bf16 %v505, %v504
  %v535 = vpack.c.bf16 %v507, %v506
  %v536 = vpack.c.bf16 %v509, %v508
  %v537 = vpack.c.bf16 %v511, %v510
  %v538 = vpack.c.bf16 %v513, %v512
  %v539 = vpack.c.bf16 %v515, %v514
  %v540 = vpack.c.bf16 %v517, %v516
  %v541 = vpack.c.bf16 %v519, %v518
  %v542 = vpack.c.bf16 %v521, %v520
  %v543 = vpack.c.bf16 %v523, %v522
  %v544 = vpack.c.bf16 %v525, %v524
  %v545 = vpack.c.bf16 %v527, %v526
  %v546 = vpack.c.bf16 %v529, %v528
  %v547 = vpack.c.bf16 %v531, %v530
  %v548 = vld [vmem:[%s4] sm:$0xf]
  %v549 = vld [vmem:[%s4 + $0x4] sm:$0xf]
  %v550 = vld [vmem:[%s4 + $0x8] sm:$0xf]
  %v551 = vld [vmem:[%s4 + $0xc] sm:$0xf]
  %v552 = vld [vmem:[%s4 + $0x10] sm:$0xf]
  %v553 = vld [vmem:[%s4 + $0x14] sm:$0xf]
  %v554 = vld [vmem:[%s4 + $0x18] sm:$0xf]
  %v555 = vld [vmem:[%s4 + $0x1c] sm:$0xf]
  %v556 = vld [vmem:[%s4 + $0x20] sm:$0xf]
  %v557 = vld [vmem:[%s4 + $0x24] sm:$0xf]
  %v558 = vld [vmem:[%s4 + $0x28] sm:$0xf]
  %v559 = vld [vmem:[%s4 + $0x2c] sm:$0xf]
  %v560 = vld [vmem:[%s4 + $0x30] sm:$0xf]
  %v561 = vld [vmem:[%s4 + $0x34] sm:$0xf]
  %v562 = vld [vmem:[%s4 + $0x38] sm:$0xf]
  %v563 = vld [vmem:[%s4 + $0x3c] sm:$0xf]
  %v564 = vld [vmem:[%s5] sm:$0x1]
  %v566 = vlaneseq
  %v567 = vshrl.u32 %v566, 7
  %v568 = vsub.s32 0, %v567
  %v569 = vrot.slane %v564, %v568
  %v587 = vunpack.c.l.b16 %v548
  %v588 = vunpack.c.l.b16 %v549
  %v589 = vunpack.c.l.b16 %v550
  %v590 = vunpack.c.l.b16 %v551
  %v591 = vunpack.c.l.b16 %v552
  %v592 = vunpack.c.l.b16 %v553
  %v593 = vunpack.c.l.b16 %v554
  %v594 = vunpack.c.l.b16 %v555
  %v595 = vunpack.c.l.b16 %v556
  %v596 = vunpack.c.l.b16 %v557
  %v597 = vunpack.c.l.b16 %v558
  %v598 = vunpack.c.l.b16 %v559
  %v599 = vunpack.c.l.b16 %v560
  %v600 = vunpack.c.l.b16 %v561
  %v601 = vunpack.c.l.b16 %v562
  %v602 = vunpack.c.l.b16 %v563
  %v603 = vpack.c.b16 %v588, %v587
  %v604 = vpack.c.b16 %v590, %v589
  %v605 = vpack.c.b16 %v592, %v591
  %v606 = vpack.c.b16 %v594, %v593
  %v607 = vpack.c.b16 %v596, %v595
  %v608 = vpack.c.b16 %v598, %v597
  %v609 = vpack.c.b16 %v600, %v599
  %v610 = vpack.c.b16 %v602, %v601
  %619 = vmatprep.subr.bf16.mxu0 0
  %620 = vmatpush1.bf16.msra.mxu0 %v603
  %621 = vmatprep.subr.bf16.mxu0 0
  %622 = vmatpush1.bf16.msra.mxu0 %v604
  %623 = vmatprep.subr.bf16.mxu0 0
  %624 = vmatpush1.bf16.msra.mxu0 %v605
  %625 = vmatprep.subr.bf16.mxu0 0
  %626 = vmatpush1.bf16.msra.mxu0 %v606
  %627 = vmatprep.subr.bf16.mxu0 0
  %628 = vmatpush1.bf16.msra.mxu0 %v607
  %629 = vmatprep.subr.bf16.mxu0 0
  %630 = vmatpush1.bf16.msra.mxu0 %v608
  %631 = vmatprep.subr.bf16.mxu0 0
  %632 = vmatpush1.bf16.msra.mxu0 %v609
  %633 = vmatprep.subr.bf16.mxu0 0
  %634 = vmatpush1.bf16.msra.mxu0 %v610
  %635 = vmatprep.subr.bf16.mxu0 0
  %636 = vmatpush1.bf16.msra.mxu0 0
  %637 = vmatprep.subr.bf16.mxu0 0
  %638 = vmatpush1.bf16.msra.mxu0 0
  %639 = vmatprep.subr.bf16.mxu0 0
  %640 = vmatpush1.bf16.msra.mxu0 0
  %641 = vmatprep.subr.bf16.mxu0 0
  %642 = vmatpush1.bf16.msra.mxu0 0
  %643 = vmatprep.subr.bf16.mxu0 0
  %644 = vmatpush1.bf16.msra.mxu0 0
  %645 = vmatprep.subr.bf16.mxu0 0
  %646 = vmatpush1.bf16.msra.mxu0 0
  %647 = vmatprep.subr.bf16.mxu0 0
  %648 = vmatpush1.bf16.msra.mxu0 0
  %649 = vmatprep.subr.bf16.mxu0 0
  %650 = vmatpush1.bf16.msra.mxu0 0
  %651 = vmatprep.mubr.bf16.mxu0 0
  %652 = vmatmul.mubr.bf16.gmra.mrb[0].mxu0 %v532
  %v653 = vpop.f32.mrb[0].mxu0
  %v654 = vadd.f32 %v569, %v653
  %v655 = vpop.f32.mrb[0].mxu0
  %v656 = vpop.f32.mrb[0].mxu0
  %v657 = vadd.f32 %v569, %v656
  %v658 = vpop.f32.mrb[0].mxu0
  %659 = vmatprep.mubr.bf16.mxu0 0
  %660 = vmatmul.mubr.bf16.gmra.mrb[0].mxu0 %v533
  %v661 = vpop.f32.mrb[0].mxu0
  %v662 = vadd.f32 %v569, %v661
  %v663 = vpop.f32.mrb[0].mxu0
  %v664 = vpop.f32.mrb[0].mxu0
  %v665 = vadd.f32 %v569, %v664
  %v666 = vpop.f32.mrb[0].mxu0
  %667 = vmatprep.mubr.bf16.mxu0 0
  %668 = vmatmul.mubr.bf16.gmra.mrb[0].mxu0 %v534
  %v669 = vpop.f32.mrb[0].mxu0
  %v670 = vadd.f32 %v569, %v669
  %v671 = vpop.f32.mrb[0].mxu0
  %v672 = vpop.f32.mrb[0].mxu0
  %v673 = vadd.f32 %v569, %v672
  %v674 = vpop.f32.mrb[0].mxu0
  %675 = vmatprep.mubr.bf16.mxu0 0
  %676 = vmatmul.mubr.bf16.gmra.mrb[0].mxu0 %v535
  %v677 = vpop.f32.mrb[0].mxu0
  %v678 = vadd.f32 %v569, %v677
  %v679 = vpop.f32.mrb[0].mxu0
  %v680 = vpop.f32.mrb[0].mxu0
  %v681 = vadd.f32 %v569, %v680
  %v682 = vpop.f32.mrb[0].mxu0
  %683 = vmatprep.mubr.bf16.mxu0 0
  %684 = vmatmul.mubr.bf16.gmra.mrb[0].mxu0 %v536
  %v685 = vpop.f32.mrb[0].mxu0
  %v686 = vadd.f32 %v569, %v685
  %v687 = vpop.f32.mrb[0].mxu0
  %v688 = vpop.f32.mrb[0].mxu0
  %v689 = vadd.f32 %v569, %v688
  %v690 = vpop.f32.mrb[0].mxu0
  %691 = vmatprep.mubr.bf16.mxu0 0
  %692 = vmatmul.mubr.bf16.gmra.mrb[0].mxu0 %v537
  %v693 = vpop.f32.mrb[0].mxu0
  %v694 = vadd.f32 %v569, %v693
  %v695 = vpop.f32.mrb[0].mxu0
  %v696 = vpop.f32.mrb[0].mxu0
  %v697 = vadd.f32 %v569, %v696
  %v698 = vpop.f32.mrb[0].mxu0
  %699 = vmatprep.mubr.bf16.mxu0 0
  %700 = vmatmul.mubr.bf16.gmra.mrb[0].mxu0 %v538
  %v701 = vpop.f32.mrb[0].mxu0
  %v702 = vadd.f32 %v569, %v701
  %v703 = vpop.f32.mrb[0].mxu0
  %v704 = vpop.f32.mrb[0].mxu0
  %v705 = vadd.f32 %v569, %v704
  %v706 = vpop.f32.mrb[0].mxu0
  %707 = vmatprep.mubr.bf16.mxu0 0
  %708 = vmatmul.mubr.bf16.gmra.mrb[0].mxu0 %v539
  %v709 = vpop.f32.mrb[0].mxu0
  %v710 = vadd.f32 %v569, %v709
  %v711 = vpop.f32.mrb[0].mxu0
  %v712 = vpop.f32.mrb[0].mxu0
  %v713 = vadd.f32 %v569, %v712
  %v714 = vpop.f32.mrb[0].mxu0
  %715 = vmatprep.mubr.bf16.mxu0 0
  %716 = vmatmul.mubr.bf16.gmra.mrb[0].mxu0 %v540
  %v717 = vpop.f32.mrb[0].mxu0
  %v718 = vadd.f32 %v569, %v717
  %v719 = vpop.f32.mrb[0].mxu0
  %v720 = vpop.f32.mrb[0].mxu0
  %v721 = vadd.f32 %v569, %v720
  %v722 = vpop.f32.mrb[0].mxu0
  %723 = vmatprep.mubr.bf16.mxu0 0
  %724 = vmatmul.mubr.bf16.gmra.mrb[0].mxu0 %v541
  %v725 = vpop.f32.mrb[0].mxu0
  %v726 = vadd.f32 %v569, %v725
  %v727 = vpop.f32.mrb[0].mxu0
  %v728 = vpop.f32.mrb[0].mxu0
  %v729 = vadd.f32 %v569, %v728
  %v730 = vpop.f32.mrb[0].mxu0
  %731 = vmatprep.mubr.bf16.mxu0 0
  %732 = vmatmul.mubr.bf16.gmra.mrb[0].mxu0 %v542
  %v733 = vpop.f32.mrb[0].mxu0
  %v734 = vadd.f32 %v569, %v733
  %v735 = vpop.f32.mrb[0].mxu0
  %v736 = vpop.f32.mrb[0].mxu0
  %v737 = vadd.f32 %v569, %v736
  %v738 = vpop.f32.mrb[0].mxu0
  %739 = vmatprep.mubr.bf16.mxu0 0
  %740 = vmatmul.mubr.bf16.gmra.mrb[0].mxu0 %v543
  %v741 = vpop.f32.mrb[0].mxu0
  %v742 = vadd.f32 %v569, %v741
  %v743 = vpop.f32.mrb[0].mxu0
  %v744 = vpop.f32.mrb[0].mxu0
  %v745 = vadd.f32 %v569, %v744
  %v746 = vpop.f32.mrb[0].mxu0
  %747 = vmatprep.mubr.bf16.mxu0 0
  %748 = vmatmul.mubr.bf16.gmra.mrb[0].mxu0 %v544
  %v749 = vpop.f32.mrb[0].mxu0
  %v750 = vadd.f32 %v569, %v749
  %v751 = vpop.f32.mrb[0].mxu0
  %v752 = vpop.f32.mrb[0].mxu0
  %v753 = vadd.f32 %v569, %v752
  %v754 = vpop.f32.mrb[0].mxu0
  %755 = vmatprep.mubr.bf16.mxu0 0
  %756 = vmatmul.mubr.bf16.gmra.mrb[0].mxu0 %v545
  %v757 = vpop.f32.mrb[0].mxu0
  %v758 = vadd.f32 %v569, %v757
  %v759 = vpop.f32.mrb[0].mxu0
  %v760 = vpop.f32.mrb[0].mxu0
  %v761 = vadd.f32 %v569, %v760
  %v762 = vpop.f32.mrb[0].mxu0
  %763 = vmatprep.mubr.bf16.mxu0 0
  %764 = vmatmul.mubr.bf16.gmra.mrb[0].mxu0 %v546
  %v765 = vpop.f32.mrb[0].mxu0
  %v766 = vadd.f32 %v569, %v765
  %v767 = vpop.f32.mrb[0].mxu0
  %v768 = vpop.f32.mrb[0].mxu0
  %v769 = vadd.f32 %v569, %v768
  %v770 = vpop.f32.mrb[0].mxu0
  %771 = vmatprep.mubr.bf16.mxu0 0
  %772 = vmatmul.mubr.bf16.gmra.mrb[0].mxu0 %v547
  %v773 = vpop.f32.mrb[0].mxu0
  %v774 = vadd.f32 %v569, %v773
  %v775 = vpop.f32.mrb[0].mxu0
  %v776 = vpop.f32.mrb[0].mxu0
  %v777 = vadd.f32 %v569, %v776
  %v778 = vpop.f32.mrb[0].mxu0
  %779 = vdwg.mxu0
  %vm780 = vcmp.gt.f32.partialorder %v654, 0.0
  %vm781 = vcmp.gt.f32.partialorder %v657, 0.0
  %vm782 = vcmp.gt.f32.partialorder %v662, 0.0
  %vm783 = vcmp.gt.f32.partialorder %v665, 0.0
  %vm784 = vcmp.gt.f32.partialorder %v670, 0.0
  %vm785 = vcmp.gt.f32.partialorder %v673, 0.0
  %vm786 = vcmp.gt.f32.partialorder %v678, 0.0
  %vm787 = vcmp.gt.f32.partialorder %v681, 0.0
  %vm788 = vcmp.gt.f32.partialorder %v686, 0.0
  %vm789 = vcmp.gt.f32.partialorder %v689, 0.0
  %vm790 = vcmp.gt.f32.partialorder %v694, 0.0
  %vm791 = vcmp.gt.f32.partialorder %v697, 0.0
  %vm792 = vcmp.gt.f32.partialorder %v702, 0.0
  %vm793 = vcmp.gt.f32.partialorder %v705, 0.0
  %vm794 = vcmp.gt.f32.partialorder %v710, 0.0
  %vm795 = vcmp.gt.f32.partialorder %v713, 0.0
  %vm796 = vcmp.gt.f32.partialorder %v718, 0.0
  %vm797 = vcmp.gt.f32.partialorder %v721, 0.0
  %vm798 = vcmp.gt.f32.partialorder %v726, 0.0
  %vm799 = vcmp.gt.f32.partialorder %v729, 0.0
  %vm800 = vcmp.gt.f32.partialorder %v734, 0.0
  %vm801 = vcmp.gt.f32.partialorder %v737, 0.0
  %vm802 = vcmp.gt.f32.partialorder %v742, 0.0
  %vm803 = vcmp.gt.f32.partialorder %v745, 0.0
  %vm804 = vcmp.gt.f32.partialorder %v750, 0.0
  %vm805 = vcmp.gt.f32.partialorder %v753, 0.0
  %vm806 = vcmp.gt.f32.partialorder %v758, 0.0
  %vm807 = vcmp.gt.f32.partialorder %v761, 0.0
  %vm808 = vcmp.gt.f32.partialorder %v766, 0.0
  %vm809 = vcmp.gt.f32.partialorder %v769, 0.0
  %vm810 = vcmp.gt.f32.partialorder %v774, 0.0
  %vm811 = vcmp.gt.f32.partialorder %v777, 0.0
  %v812 = vmul.f32 %v654, 1.442695
  %v813 = vpow.pop %v812
  %v814 = vmul.f32 %v657, 1.442695
  %v815 = vpow.pop %v814
  %v816 = vmul.f32 %v662, 1.442695
  %v817 = vpow.pop %v816
  %v818 = vmul.f32 %v665, 1.442695
  %v819 = vpow.pop %v818
  %v820 = vmul.f32 %v670, 1.442695
  %v821 = vpow.pop %v820
  %v822 = vmul.f32 %v673, 1.442695
  %v823 = vpow.pop %v822
  %v824 = vmul.f32 %v678, 1.442695
  %v825 = vpow.pop %v824
  %v826 = vmul.f32 %v681, 1.442695
  %v827 = vpow.pop %v826
  %v828 = vmul.f32 %v686, 1.442695
  %v829 = vpow.pop %v828
  %v830 = vmul.f32 %v689, 1.442695
  %v831 = vpow.pop %v830
  %v832 = vmul.f32 %v694, 1.442695
  %v833 = vpow.pop %v832
  %v834 = vmul.f32 %v697, 1.442695
  %v835 = vpow.pop %v834
  %v836 = vmul.f32 %v702, 1.442695
  %v837 = vpow.pop %v836
  %v838 = vmul.f32 %v705, 1.442695
  %v839 = vpow.pop %v838
  %v840 = vmul.f32 %v710, 1.442695
  %v841 = vpow.pop %v840
  %v842 = vmul.f32 %v713, 1.442695
  %v843 = vpow.pop %v842
  %v844 = vmul.f32 %v718, 1.442695
  %v845 = vpow.pop %v844
  %v846 = vmul.f32 %v721, 1.442695
  %v847 = vpow.pop %v846
  %v848 = vmul.f32 %v726, 1.442695
  %v849 = vpow.pop %v848
  %v850 = vmul.f32 %v729, 1.442695
  %v851 = vpow.pop %v850
  %v852 = vmul.f32 %v734, 1.442695
  %v853 = vpow.pop %v852
  %v854 = vmul.f32 %v737, 1.442695
  %v855 = vpow.pop %v854
  %v856 = vmul.f32 %v742, 1.442695
  %v857 = vpow.pop %v856
  %v858 = vmul.f32 %v745, 1.442695
  %v859 = vpow.pop %v858
  %v860 = vmul.f32 %v750, 1.442695
  %v861 = vpow.pop %v860
  %v862 = vmul.f32 %v753, 1.442695
  %v863 = vpow.pop %v862
  %v864 = vmul.f32 %v758, 1.442695
  %v865 = vpow.pop %v864
  %v866 = vmul.f32 %v761, 1.442695
  %v867 = vpow.pop %v866
  %v868 = vmul.f32 %v766, 1.442695
  %v869 = vpow.pop %v868
  %v870 = vmul.f32 %v769, 1.442695
  %v871 = vpow.pop %v870
  %v872 = vmul.f32 %v774, 1.442695
  %v873 = vpow.pop %v872
  %v874 = vmul.f32 %v777, 1.442695
  %v875 = vpow.pop %v874
  %v876 = vsub.f32 %v813, 1.0
  %v877 = vsub.f32 %v815, 1.0
  %v878 = vsub.f32 %v817, 1.0
  %v879 = vsub.f32 %v819, 1.0
  %v880 = vsub.f32 %v821, 1.0
  %v881 = vsub.f32 %v823, 1.0
  %v882 = vsub.f32 %v825, 1.0
  %v883 = vsub.f32 %v827, 1.0
  %v884 = vsub.f32 %v829, 1.0
  %v885 = vsub.f32 %v831, 1.0
  %v886 = vsub.f32 %v833, 1.0
  %v887 = vsub.f32 %v835, 1.0
  %v888 = vsub.f32 %v837, 1.0
  %v889 = vsub.f32 %v839, 1.0
  %v890 = vsub.f32 %v841, 1.0
  %v891 = vsub.f32 %v843, 1.0
  %v892 = vsub.f32 %v845, 1.0
  %v893 = vsub.f32 %v847, 1.0
  %v894 = vsub.f32 %v849, 1.0
  %v895 = vsub.f32 %v851, 1.0
  %v896 = vsub.f32 %v853, 1.0
  %v897 = vsub.f32 %v855, 1.0
  %v898 = vsub.f32 %v857, 1.0
  %v899 = vsub.f32 %v859, 1.0
  %v900 = vsub.f32 %v861, 1.0
  %v901 = vsub.f32 %v863, 1.0
  %v902 = vsub.f32 %v865, 1.0
  %v903 = vsub.f32 %v867, 1.0
  %v904 = vsub.f32 %v869, 1.0
  %v905 = vsub.f32 %v871, 1.0
  %v906 = vsub.f32 %v873, 1.0
  %v907 = vsub.f32 %v875, 1.0
  %v908 = vsel %vm780, %v654, %v876
  %v909 = vsel %vm781, %v657, %v877
  %v910 = vsel %vm782, %v662, %v878
  %v911 = vsel %vm783, %v665, %v879
  %v912 = vsel %vm784, %v670, %v880
  %v913 = vsel %vm785, %v673, %v881
  %v914 = vsel %vm786, %v678, %v882
  %v915 = vsel %vm787, %v681, %v883
  %v916 = vsel %vm788, %v686, %v884
  %v917 = vsel %vm789, %v689, %v885
  %v918 = vsel %vm790, %v694, %v886
  %v919 = vsel %vm791, %v697, %v887
  %v920 = vsel %vm792, %v702, %v888
  %v921 = vsel %vm793, %v705, %v889
  %v922 = vsel %vm794, %v710, %v890
  %v923 = vsel %vm795, %v713, %v891
  %v924 = vsel %vm796, %v718, %v892
  %v925 = vsel %vm797, %v721, %v893
  %v926 = vsel %vm798, %v726, %v894
  %v927 = vsel %vm799, %v729, %v895
  %v928 = vsel %vm800, %v734, %v896
  %v929 = vsel %vm801, %v737, %v897
  %v930 = vsel %vm802, %v742, %v898
  %v931 = vsel %vm803, %v745, %v899
  %v932 = vsel %vm804, %v750, %v900
  %v933 = vsel %vm805, %v753, %v901
  %v934 = vsel %vm806, %v758, %v902
  %v935 = vsel %vm807, %v761, %v903
  %v936 = vsel %vm808, %v766, %v904
  %v937 = vsel %vm809, %v769, %v905
  %v938 = vsel %vm810, %v774, %v906
  %v939 = vsel %vm811, %v777, %v907
  %v940 = vld [vmem:[%s6] sm:$0x1]
  %v942 = vlaneseq
  %v943 = vshrl.u32 %v942, 7
  %v944 = vsub.s32 0, %v943
  %v945 = vrot.slane %v940, %v944
  %v947 = vmul.f32 %v908, %v945
  %v948 = vmul.f32 %v909, %v945
  %v949 = vmul.f32 %v910, %v945
  %v950 = vmul.f32 %v911, %v945
  %v951 = vmul.f32 %v912, %v945
  %v952 = vmul.f32 %v913, %v945
  %v953 = vmul.f32 %v914, %v945
  %v954 = vmul.f32 %v915, %v945
  %v955 = vmul.f32 %v916, %v945
  %v956 = vmul.f32 %v917, %v945
  %v957 = vmul.f32 %v918, %v945
  %v958 = vmul.f32 %v919, %v945
  %v959 = vmul.f32 %v920, %v945
  %v960 = vmul.f32 %v921, %v945
  %v961 = vmul.f32 %v922, %v945
  %v962 = vmul.f32 %v923, %v945
  %v963 = vmul.f32 %v924, %v945
  %v964 = vmul.f32 %v925, %v945
  %v965 = vmul.f32 %v926, %v945
  %v966 = vmul.f32 %v927, %v945
  %v967 = vmul.f32 %v928, %v945
  %v968 = vmul.f32 %v929, %v945
  %v969 = vmul.f32 %v930, %v945
  %v970 = vmul.f32 %v931, %v945
  %v971 = vmul.f32 %v932, %v945
  %v972 = vmul.f32 %v933, %v945
  %v973 = vmul.f32 %v934, %v945
  %v974 = vmul.f32 %v935, %v945
  %v975 = vmul.f32 %v936, %v945
  %v976 = vmul.f32 %v937, %v945
  %v977 = vmul.f32 %v938, %v945
  %v978 = vmul.f32 %v939, %v945
  %979 = vadd.xlane.f32.xlu0 %v947
  %v980 = vpop.xlane.xlu0 %979
  %981 = vadd.xlane.f32.xlu0 %v948
  %v982 = vpop.xlane.xlu0 %981
  %983 = vadd.xlane.f32.xlu0 %v949
  %v984 = vpop.xlane.xlu0 %983
  %985 = vadd.xlane.f32.xlu0 %v950
  %v986 = vpop.xlane.xlu0 %985
  %987 = vadd.xlane.f32.xlu0 %v951
  %v988 = vpop.xlane.xlu0 %987
  %989 = vadd.xlane.f32.xlu0 %v952
  %v990 = vpop.xlane.xlu0 %989
  %991 = vadd.xlane.f32.xlu0 %v953
  %v992 = vpop.xlane.xlu0 %991
  %993 = vadd.xlane.f32.xlu0 %v954
  %v994 = vpop.xlane.xlu0 %993
  %995 = vadd.xlane.f32.xlu0 %v955
  %v996 = vpop.xlane.xlu0 %995
  %997 = vadd.xlane.f32.xlu0 %v956
  %v998 = vpop.xlane.xlu0 %997
  %999 = vadd.xlane.f32.xlu0 %v957
  %v1000 = vpop.xlane.xlu0 %999
  %1001 = vadd.xlane.f32.xlu0 %v958
  %v1002 = vpop.xlane.xlu0 %1001
  %1003 = vadd.xlane.f32.xlu0 %v959
  %v1004 = vpop.xlane.xlu0 %1003
  %1005 = vadd.xlane.f32.xlu0 %v960
  %v1006 = vpop.xlane.xlu0 %1005
  %1007 = vadd.xlane.f32.xlu0 %v961
  %v1008 = vpop.xlane.xlu0 %1007
  %1009 = vadd.xlane.f32.xlu0 %v962
  %v1010 = vpop.xlane.xlu0 %1009
  %1011 = vadd.xlane.f32.xlu0 %v963
  %v1012 = vpop.xlane.xlu0 %1011
  %1013 = vadd.xlane.f32.xlu0 %v964
  %v1014 = vpop.xlane.xlu0 %1013
  %1015 = vadd.xlane.f32.xlu0 %v965
  %v1016 = vpop.xlane.xlu0 %1015
  %1017 = vadd.xlane.f32.xlu0 %v966
  %v1018 = vpop.xlane.xlu0 %1017
  %1019 = vadd.xlane.f32.xlu0 %v967
  %v1020 = vpop.xlane.xlu0 %1019
  %1021 = vadd.xlane.f32.xlu0 %v968
  %v1022 = vpop.xlane.xlu0 %1021
  %1023 = vadd.xlane.f32.xlu0 %v969
  %v1024 = vpop.xlane.xlu0 %1023
  %1025 = vadd.xlane.f32.xlu0 %v970
  %v1026 = vpop.xlane.xlu0 %1025
  %1027 = vadd.xlane.f32.xlu0 %v971
  %v1028 = vpop.xlane.xlu0 %1027
  %1029 = vadd.xlane.f32.xlu0 %v972
  %v1030 = vpop.xlane.xlu0 %1029
  %1031 = vadd.xlane.f32.xlu0 %v973
  %v1032 = vpop.xlane.xlu0 %1031
  %1033 = vadd.xlane.f32.xlu0 %v974
  %v1034 = vpop.xlane.xlu0 %1033
  %1035 = vadd.xlane.f32.xlu0 %v975
  %v1036 = vpop.xlane.xlu0 %1035
  %1037 = vadd.xlane.f32.xlu0 %v976
  %v1038 = vpop.xlane.xlu0 %1037
  %1039 = vadd.xlane.f32.xlu0 %v977
  %v1040 = vpop.xlane.xlu0 %1039
  %1041 = vadd.xlane.f32.xlu0 %v978
  %v1042 = vpop.xlane.xlu0 %1041
  %v1043 = vld [vmem:[%s1] sm:$0xff]
  %v1044 = vld [vmem:[%s1 + $0x8] sm:$0xff]
  %v1045 = vld [vmem:[%s1 + $0x10] sm:$0xff]
  %v1046 = vld [vmem:[%s1 + $0x18] sm:$0xff]
  %v1047 = vld [vmem:[%s1 + $0x20] sm:$0xff]
  %v1048 = vld [vmem:[%s1 + $0x28] sm:$0xff]
  %v1049 = vld [vmem:[%s1 + $0x30] sm:$0xff]
  %v1050 = vld [vmem:[%s1 + $0x38] sm:$0xff]
  %v1051 = vld [vmem:[%s1 + $0x40] sm:$0xff]
  %v1052 = vld [vmem:[%s1 + $0x48] sm:$0xff]
  %v1053 = vld [vmem:[%s1 + $0x50] sm:$0xff]
  %v1054 = vld [vmem:[%s1 + $0x58] sm:$0xff]
  %v1055 = vld [vmem:[%s1 + $0x60] sm:$0xff]
  %v1056 = vld [vmem:[%s1 + $0x68] sm:$0xff]
  %v1057 = vld [vmem:[%s1 + $0x70] sm:$0xff]
  %v1058 = vld [vmem:[%s1 + $0x78] sm:$0xff]
  %v1059 = vld [vmem:[%s1 + $0x80] sm:$0xff]
  %v1060 = vld [vmem:[%s1 + $0x88] sm:$0xff]
  %v1061 = vld [vmem:[%s1 + $0x90] sm:$0xff]
  %v1062 = vld [vmem:[%s1 + $0x98] sm:$0xff]
  %v1063 = vld [vmem:[%s1 + $0xa0] sm:$0xff]
  %v1064 = vld [vmem:[%s1 + $0xa8] sm:$0xff]
  %v1065 = vld [vmem:[%s1 + $0xb0] sm:$0xff]
  %v1066 = vld [vmem:[%s1 + $0xb8] sm:$0xff]
  %v1067 = vld [vmem:[%s1 + $0xc0] sm:$0xff]
  %v1068 = vld [vmem:[%s1 + $0xc8] sm:$0xff]
  %v1069 = vld [vmem:[%s1 + $0xd0] sm:$0xff]
  %v1070 = vld [vmem:[%s1 + $0xd8] sm:$0xff]
  %v1071 = vld [vmem:[%s1 + $0xe0] sm:$0xff]
  %v1072 = vld [vmem:[%s1 + $0xe8] sm:$0xff]
  %v1073 = vld [vmem:[%s1 + $0xf0] sm:$0xff]
  %v1074 = vld [vmem:[%s1 + $0xf8] sm:$0xff]
  %v1075 = vsub.f32 %v980, %v1043
  %v1076 = vsub.f32 %v982, %v1044
  %v1077 = vsub.f32 %v984, %v1045
  %v1078 = vsub.f32 %v986, %v1046
  %v1079 = vsub.f32 %v988, %v1047
  %v1080 = vsub.f32 %v990, %v1048
  %v1081 = vsub.f32 %v992, %v1049
  %v1082 = vsub.f32 %v994, %v1050
  %v1083 = vsub.f32 %v996, %v1051
  %v1084 = vsub.f32 %v998, %v1052
  %v1085 = vsub.f32 %v1000, %v1053
  %v1086 = vsub.f32 %v1002, %v1054
  %v1087 = vsub.f32 %v1004, %v1055
  %v1088 = vsub.f32 %v1006, %v1056
  %v1089 = vsub.f32 %v1008, %v1057
  %v1090 = vsub.f32 %v1010, %v1058
  %v1091 = vsub.f32 %v1012, %v1059
  %v1092 = vsub.f32 %v1014, %v1060
  %v1093 = vsub.f32 %v1016, %v1061
  %v1094 = vsub.f32 %v1018, %v1062
  %v1095 = vsub.f32 %v1020, %v1063
  %v1096 = vsub.f32 %v1022, %v1064
  %v1097 = vsub.f32 %v1024, %v1065
  %v1098 = vsub.f32 %v1026, %v1066
  %v1099 = vsub.f32 %v1028, %v1067
  %v1100 = vsub.f32 %v1030, %v1068
  %v1101 = vsub.f32 %v1032, %v1069
  %v1102 = vsub.f32 %v1034, %v1070
  %v1103 = vsub.f32 %v1036, %v1071
  %v1104 = vsub.f32 %v1038, %v1072
  %v1105 = vsub.f32 %v1040, %v1073
  %v1106 = vsub.f32 %v1042, %v1074
  %v1107 = vmax.f32 %v1075, 0.0
  %v1108 = vmax.f32 %v1076, 0.0
  %v1109 = vmax.f32 %v1077, 0.0
  %v1110 = vmax.f32 %v1078, 0.0
  %v1111 = vmax.f32 %v1079, 0.0
  %v1112 = vmax.f32 %v1080, 0.0
  %v1113 = vmax.f32 %v1081, 0.0
  %v1114 = vmax.f32 %v1082, 0.0
  %v1115 = vmax.f32 %v1083, 0.0
  %v1116 = vmax.f32 %v1084, 0.0
  %v1117 = vmax.f32 %v1085, 0.0
  %v1118 = vmax.f32 %v1086, 0.0
  %v1119 = vmax.f32 %v1087, 0.0
  %v1120 = vmax.f32 %v1088, 0.0
  %v1121 = vmax.f32 %v1089, 0.0
  %v1122 = vmax.f32 %v1090, 0.0
  %v1123 = vmax.f32 %v1091, 0.0
  %v1124 = vmax.f32 %v1092, 0.0
  %v1125 = vmax.f32 %v1093, 0.0
  %v1126 = vmax.f32 %v1094, 0.0
  %v1127 = vmax.f32 %v1095, 0.0
  %v1128 = vmax.f32 %v1096, 0.0
  %v1129 = vmax.f32 %v1097, 0.0
  %v1130 = vmax.f32 %v1098, 0.0
  %v1131 = vmax.f32 %v1099, 0.0
  %v1132 = vmax.f32 %v1100, 0.0
  %v1133 = vmax.f32 %v1101, 0.0
  %v1134 = vmax.f32 %v1102, 0.0
  %v1135 = vmax.f32 %v1103, 0.0
  %v1136 = vmax.f32 %v1104, 0.0
  %v1137 = vmax.f32 %v1105, 0.0
  %v1138 = vmax.f32 %v1106, 0.0
  %vm1139 = vcmask 7168
  %1140 = vst.msk [vmem:[%s7] sm:$0xff] %vm1139, %v1107
  %1141 = vst.msk [vmem:[%s7 + $0x8] sm:$0xff] %vm1139, %v1108
  %1142 = vst.msk [vmem:[%s7 + $0x10] sm:$0xff] %vm1139, %v1109
  %1143 = vst.msk [vmem:[%s7 + $0x18] sm:$0xff] %vm1139, %v1110
  %1144 = vst.msk [vmem:[%s7 + $0x20] sm:$0xff] %vm1139, %v1111
  %1145 = vst.msk [vmem:[%s7 + $0x28] sm:$0xff] %vm1139, %v1112
  %1146 = vst.msk [vmem:[%s7 + $0x30] sm:$0xff] %vm1139, %v1113
  %1147 = vst.msk [vmem:[%s7 + $0x38] sm:$0xff] %vm1139, %v1114
  %1148 = vst.msk [vmem:[%s7 + $0x40] sm:$0xff] %vm1139, %v1115
  %1149 = vst.msk [vmem:[%s7 + $0x48] sm:$0xff] %vm1139, %v1116
  %1150 = vst.msk [vmem:[%s7 + $0x50] sm:$0xff] %vm1139, %v1117
  %1151 = vst.msk [vmem:[%s7 + $0x58] sm:$0xff] %vm1139, %v1118
  %1152 = vst.msk [vmem:[%s7 + $0x60] sm:$0xff] %vm1139, %v1119
  %1153 = vst.msk [vmem:[%s7 + $0x68] sm:$0xff] %vm1139, %v1120
  %1154 = vst.msk [vmem:[%s7 + $0x70] sm:$0xff] %vm1139, %v1121
  %1155 = vst.msk [vmem:[%s7 + $0x78] sm:$0xff] %vm1139, %v1122
  %1156 = vst.msk [vmem:[%s7 + $0x80] sm:$0xff] %vm1139, %v1123
  %1157 = vst.msk [vmem:[%s7 + $0x88] sm:$0xff] %vm1139, %v1124
  %1158 = vst.msk [vmem:[%s7 + $0x90] sm:$0xff] %vm1139, %v1125
  %1159 = vst.msk [vmem:[%s7 + $0x98] sm:$0xff] %vm1139, %v1126
  %1160 = vst.msk [vmem:[%s7 + $0xa0] sm:$0xff] %vm1139, %v1127
  %1161 = vst.msk [vmem:[%s7 + $0xa8] sm:$0xff] %vm1139, %v1128
  %1162 = vst.msk [vmem:[%s7 + $0xb0] sm:$0xff] %vm1139, %v1129
  %1163 = vst.msk [vmem:[%s7 + $0xb8] sm:$0xff] %vm1139, %v1130
  %1164 = vst.msk [vmem:[%s7 + $0xc0] sm:$0xff] %vm1139, %v1131
  %1165 = vst.msk [vmem:[%s7 + $0xc8] sm:$0xff] %vm1139, %v1132
  %1166 = vst.msk [vmem:[%s7 + $0xd0] sm:$0xff] %vm1139, %v1133
  %1167 = vst.msk [vmem:[%s7 + $0xd8] sm:$0xff] %vm1139, %v1134
  %1168 = vst.msk [vmem:[%s7 + $0xe0] sm:$0xff] %vm1139, %v1135
  %1169 = vst.msk [vmem:[%s7 + $0xe8] sm:$0xff] %vm1139, %v1136
  %1170 = vst.msk [vmem:[%s7 + $0xf0] sm:$0xff] %vm1139, %v1137
  %1171 = vst.msk [vmem:[%s7 + $0xf8] sm:$0xff] %vm1139, %v1138
  // Predicated region
  $region30: #{tpu_custom_call.1} parent=0 // pred_check
    _
  $region31: #{tpu_custom_call.1} parent=0 // pred_check_branch
    %1173 = sbr.rel (0) target = $region33
  $region32: #{tpu_custom_call.1} parent=0 // pred_region
    _
  $region33: #{tpu_custom_call.1} parent=0 // pred_fallthru
    _
  // Predicated region
  $region34: #{tpu_custom_call.1} parent=0 // pred_check
    _
  $region35: #{tpu_custom_call.1} parent=0 // pred_check_branch
    %1175 = sbr.rel (0) target = $region37
  $region36: #{tpu_custom_call.1} parent=0 // pred_region
    _
  $region37: #{tpu_custom_call.1} parent=0 // pred_fallthru
    _

</llo_original>
